<compile_context>
chip_gen: v7x
topology: tpu7x:2x2x1
jax: 0.10.0
libtpu: 0.0.40
codegen_flags: <defaults>
</compile_context>

<pallas_src>
import functools

import jax
import jax.numpy as jnp
from jax.experimental import pallas as pl
from jax.experimental.pallas import tpu as pltpu


def _round_up(x, m):
    return ((x + m - 1) // m) * m


def encoder_kernel(patches_ref, w_embed_ref, b_embed_ref,
                   w_head_ref, b_head_ref, out_ref, *, tb, n_patches):
    # patches_ref: [TB*Np, K_pad] bf16   (TB whole images' patch rows, image-major)
    # w_embed_ref: [K_pad, D_pad] bf16,  b_embed_ref: [1, D_pad] f32
    # w_head_ref : [D_pad, F_pad] bf16,  b_head_ref : [1, F_pad] f32
    # out_ref    : [TB, F_pad] f32
    tokens = jnp.dot(patches_ref[...], w_embed_ref[...],
                     preferred_element_type=jnp.float32)            # MXU, [TB*Np, D_pad]
    tokens = jnp.maximum(tokens + b_embed_ref[...], 0.0)            # VPU f32 bias + ReLU
    d_pad = tokens.shape[-1]
    # Global average pool per image (Np consecutive rows belong to one image).
    pooled = tokens.reshape(tb, n_patches, d_pad).sum(axis=1) * (1.0 / n_patches)
    feat = jnp.dot(pooled.astype(w_head_ref.dtype), w_head_ref[...],
                   preferred_element_type=jnp.float32)              # MXU, [TB, F_pad]
    out_ref[...] = (feat + b_head_ref[...]).astype(out_ref.dtype)   # lane-dense store


def _choose_batch_tiling(batch, n_patches, target_m=256):
    """Pick (TB, num_tiles): TB a multiple of 8 so the (TB, F_pad) output block
    is sublane-aligned and TB*Np gives the MXU a healthy M dimension; keep
    >= 2 parallel grid tiles when possible so both v7x TensorCores get work."""
    tb = _round_up(max(1, pl.cdiv(target_m, n_patches)), 8)
    tb = min(tb, _round_up(batch, 8))
    num_tiles = pl.cdiv(batch, tb)
    if num_tiles < 2 and batch >= 2:
        num_tiles = 2
        tb = _round_up(pl.cdiv(batch, num_tiles), 8)
    return tb, num_tiles


def feature_extractor_forward(x, w_embed, b_embed, w_head, b_head, patch):
    """x: [B, C, H, W] float32 (NCHW). Returns features [B, F] float32."""
    B, C, H, W = x.shape
    P = patch
    Hp, Wp = H // P, W // P
    Np = Hp * Wp
    K = C * P * P
    D = w_embed.shape[1]
    F = w_head.shape[1]

    # Padded, lane/sublane-aligned problem sizes.
    K_pad = _round_up(K, 128)
    D_pad = _round_up(D, 128)
    F_pad = _round_up(F, 128)
    TB, num_tiles = _choose_batch_tiling(B, Np)
    B_pad = TB * num_tiles

    # --- JAX glue: im2col patch extraction (stride-P conv as matmul). ---
    # TODO(synk): this materializes one extra copy of x in HBM; at real encoder
    # sizes move the patch gather into the kernel (block over (B, Hp)) or use
    # allow_input_fusion to avoid the extra input-bandwidth round-trip.
    patches = x.reshape(B, C, Hp, P, Wp, P)
    patches = patches.transpose(0, 2, 4, 1, 3, 5).reshape(B, Np, K)
    patches = jnp.pad(patches, ((0, B_pad - B), (0, 0), (0, K_pad - K)))
    patches = patches.reshape(B_pad * Np, K_pad).astype(jnp.bfloat16)

    # Zero-pad params to lane-dense shapes; bf16 MXU operands, f32 biases.
    w_embed_p = jnp.pad(w_embed, ((0, K_pad - K), (0, D_pad - D))).astype(jnp.bfloat16)
    b_embed_p = jnp.pad(b_embed, (0, D_pad - D)).reshape(1, D_pad).astype(jnp.float32)
    w_head_p = jnp.pad(w_head, ((0, D_pad - D), (0, F_pad - F))).astype(jnp.bfloat16)
    b_head_p = jnp.pad(b_head, (0, F_pad - F)).reshape(1, F_pad).astype(jnp.float32)

    kernel = functools.partial(encoder_kernel, tb=TB, n_patches=Np)

    # TODO(synk): at real encoder sizes, single-buffer the constant weight
    # operands (pipeline_mode=pl.Buffered(1) or one-time VMEM scratch copy) and
    # re-derive the patches tile / vmem_limit_bytes against v7x's 64 MiB VMEM.
    out = pl.pallas_call(
        kernel,
        out_shape=jax.ShapeDtypeStruct((B_pad, F_pad), jnp.float32),
        grid=(num_tiles,),
        in_specs=[
            pl.BlockSpec((TB * Np, K_pad), lambda i: (i, 0)),   # this tile's patch rows
            pl.BlockSpec((K_pad, D_pad), lambda i: (0, 0)),     # constant weights
            pl.BlockSpec((1, D_pad), lambda i: (0, 0)),
            pl.BlockSpec((D_pad, F_pad), lambda i: (0, 0)),
            pl.BlockSpec((1, F_pad), lambda i: (0, 0)),
        ],
        out_specs=pl.BlockSpec((TB, F_pad), lambda i: (i, 0)),  # (8k,128k) lane-dense block
        compiler_params=pltpu.CompilerParams(
            dimension_semantics=("parallel",)),
    )(patches, w_embed_p, b_embed_p, w_head_p, b_head_p)

    return out[:B, :F]


def reference_forward(x, w_embed, b_embed, w_head, b_head, patch):
    B, C, H, W = x.shape
    P = patch
    Hp, Wp = H // P, W // P
    patches = x.reshape(B, C, Hp, P, Wp, P).transpose(0, 2, 4, 1, 3, 5)
    patches = patches.reshape(B, Hp * Wp, C * P * P)
    tokens = jnp.maximum(patches @ w_embed + b_embed[None, None, :], 0.0)
    pooled = tokens.mean(axis=1)
    return pooled @ w_head + b_head[None, :]


if __name__ == "__main__":
    # Small shapes consistent with an image encoder: B=2, C=4, H=W=16, patch=4.
    B, C, H, W = 2, 4, 16, 16
    P = 4
    D = 32   # embed dim
    F = 32   # output feature dim
    K = C * P * P

    key = jax.random.PRNGKey(0)
    kx, kw1, kb1, kw2, kb2 = jax.random.split(key, 5)
    x = jax.random.normal(kx, (B, C, H, W), dtype=jnp.float32)
    w_embed = jax.random.normal(kw1, (K, D), dtype=jnp.float32) * 0.05
    b_embed = jax.random.normal(kb1, (D,), dtype=jnp.float32) * 0.01
    w_head = jax.random.normal(kw2, (D, F), dtype=jnp.float32) * 0.05
    b_head = jax.random.normal(kb2, (F,), dtype=jnp.float32) * 0.01

    out = feature_extractor_forward(x, w_embed, b_embed, w_head, b_head, P)
    out = jax.block_until_ready(out)

    ref = reference_forward(x, w_embed, b_embed, w_head, b_head, P)
    assert out.shape == (B, F), out.shape
    # bf16 MXU operands (f32 accumulation) -> tolerance loosened vs pure-f32 ref.
    max_diff = float(jnp.max(jnp.abs(out - ref)))
    assert jnp.allclose(out, ref, atol=2e-2, rtol=2e-2), max_diff

    print("KERNEL_OK")
</pallas_src>

<mosaic_0001>
module attributes {stable_mosaic.version = 11 : i64} {
  func.func @encoder_kernel(%arg0: i32, %arg1: memref<128x128xbf16, #tpu.memory_space<vmem>>, %arg2: memref<128x128xbf16, #tpu.memory_space<vmem>>, %arg3: memref<1x128xf32, #tpu.memory_space<vmem>>, %arg4: memref<128x128xbf16, #tpu.memory_space<vmem>>, %arg5: memref<1x128xf32, #tpu.memory_space<vmem>>, %arg6: memref<8x128xf32, #tpu.memory_space<vmem>>) attributes {dimension_semantics = [#tpu.dimension_semantics<parallel>], iteration_bounds = array<i64: 2>, scalar_prefetch = 0 : i64, scratch_operands = 0 : i64, tpu.core_type = #tpu.core_type<tc>, window_params = [{transform_indices = @transform_0, window_bounds = array<i64: 128, 128>}, {pipeline_mode = #tpu.pipeline_mode<synchronous>, transform_indices = @transform_1, window_bounds = array<i64: 128, 128>}, {pipeline_mode = #tpu.pipeline_mode<synchronous>, transform_indices = @transform_2, window_bounds = array<i64: 1, 128>}, {pipeline_mode = #tpu.pipeline_mode<synchronous>, transform_indices = @transform_3, window_bounds = array<i64: 128, 128>}, {pipeline_mode = #tpu.pipeline_mode<synchronous>, transform_indices = @transform_4, window_bounds = array<i64: 1, 128>}, {transform_indices = @transform_5, window_bounds = array<i64: 8, 128>}]} {
    %c0 = arith.constant 0 : index
    %c0_0 = arith.constant 0 : index
    %0 = vector.load %arg1[%c0, %c0_0] : memref<128x128xbf16, #tpu.memory_space<vmem>>, vector<128x128xbf16>
    %c0_1 = arith.constant 0 : index
    %c0_2 = arith.constant 0 : index
    %1 = vector.load %arg2[%c0_1, %c0_2] : memref<128x128xbf16, #tpu.memory_space<vmem>>, vector<128x128xbf16>
    %cst = arith.constant dense<0.000000e+00> : vector<128x128xf32>
    %2 = tpu.matmul %0, %1, %cst {dimension_numbers = #tpu.dot_dimension_numbers<[1], [0], [0], [1], [0, 0, 1, 1], [], []>} : vector<128x128xbf16>, vector<128x128xbf16>, vector<128x128xf32> -> vector<128x128xf32>
    %c0_3 = arith.constant 0 : index
    %c0_4 = arith.constant 0 : index
    %3 = vector.load %arg3[%c0_3, %c0_4] : memref<1x128xf32, #tpu.memory_space<vmem>>, vector<1x128xf32>
    %4 = vector.broadcast %3 : vector<1x128xf32> to vector<128x128xf32>
    %5 = arith.addf %2, %4 : vector<128x128xf32>
    %cst_5 = arith.constant 0.000000e+00 : f32
    %6 = vector.broadcast %cst_5 : f32 to vector<128x128xf32>
    %7 = arith.maximumf %5, %6 : vector<128x128xf32>
    %8 = vector.shape_cast %7 : vector<128x128xf32> to vector<8x16x128xf32>
    %cst_6 = arith.constant dense<0.000000e+00> : vector<8x128xf32>
    %9 = vector.multi_reduction <add>, %8, %cst_6 [1] : vector<8x16x128xf32> to vector<8x128xf32>
    %cst_7 = arith.constant 6.250000e-02 : f32
    %10 = vector.broadcast %cst_7 : f32 to vector<8x128xf32>
    %11 = arith.mulf %9, %10 : vector<8x128xf32>
    %12 = arith.truncf %11 : vector<8x128xf32> to vector<8x128xbf16>
    %c0_8 = arith.constant 0 : index
    %c0_9 = arith.constant 0 : index
    %13 = vector.load %arg4[%c0_8, %c0_9] : memref<128x128xbf16, #tpu.memory_space<vmem>>, vector<128x128xbf16>
    %cst_10 = arith.constant dense<0.000000e+00> : vector<8x128xf32>
    %14 = tpu.matmul %12, %13, %cst_10 {dimension_numbers = #tpu.dot_dimension_numbers<[1], [0], [0], [1], [0, 0, 1, 1], [], []>} : vector<8x128xbf16>, vector<128x128xbf16>, vector<8x128xf32> -> vector<8x128xf32>
    %c0_11 = arith.constant 0 : index
    %c0_12 = arith.constant 0 : index
    %15 = vector.load %arg5[%c0_11, %c0_12] : memref<1x128xf32, #tpu.memory_space<vmem>>, vector<1x128xf32>
    %16 = vector.broadcast %15 : vector<1x128xf32> to vector<8x128xf32>
    %17 = arith.addf %14, %16 : vector<8x128xf32>
    %c0_13 = arith.constant 0 : index
    %c0_14 = arith.constant 0 : index
    %18 = vector.load %arg6[%c0_13, %c0_14] : memref<8x128xf32, #tpu.memory_space<vmem>>, vector<8x128xf32>
    tpu.vector_store %arg6[%c0_13, %c0_14], %17 {strides = array<i32>} : memref<8x128xf32, #tpu.memory_space<vmem>>, vector<8x128xf32>,
    return
  }
  func.func @transform_0(%arg0: i32) -> (i32, i32) {
    %c0_i32 = arith.constant 0 : i32
    %c0_i32_0 = arith.constant 0 : i32
    return %arg0, %c0_i32 : i32, i32
  }
  func.func @transform_1(%arg0: i32) -> (i32, i32) {
    %c0_i32 = arith.constant 0 : i32
    %c0_i32_0 = arith.constant 0 : i32
    %c0_i32_1 = arith.constant 0 : i32
    return %c0_i32, %c0_i32_0 : i32, i32
  }
  func.func @transform_2(%arg0: i32) -> (i32, i32) {
    %c0_i32 = arith.constant 0 : i32
    %c0_i32_0 = arith.constant 0 : i32
    %c0_i32_1 = arith.constant 0 : i32
    return %c0_i32, %c0_i32_0 : i32, i32
  }
  func.func @transform_3(%arg0: i32) -> (i32, i32) {
    %c0_i32 = arith.constant 0 : i32
    %c0_i32_0 = arith.constant 0 : i32
    %c0_i32_1 = arith.constant 0 : i32
    return %c0_i32, %c0_i32_0 : i32, i32
  }
  func.func @transform_4(%arg0: i32) -> (i32, i32) {
    %c0_i32 = arith.constant 0 : i32
    %c0_i32_0 = arith.constant 0 : i32
    %c0_i32_1 = arith.constant 0 : i32
    return %c0_i32, %c0_i32_0 : i32, i32
  }
  func.func @transform_5(%arg0: i32) -> (i32, i32) {
    %c0_i32 = arith.constant 0 : i32
    %c0_i32_0 = arith.constant 0 : i32
    return %arg0, %c0_i32 : i32, i32
  }
}

</mosaic_0001>

<llo_original>
// kernel: tpu_custom_call.1
$region0: #{tpu_custom_call.1}
  #allocation0 [shape = 'u32[]', space=smem, size = 0x4, offset = 0x4, fixed_abs, tag = 'smem constant byte address 0x4 - core index']
  #allocation1 [shape = 'u32[144,128]{1,0:T(1,128)}', space=vmem, size = 0x12000, scoped, tag = 'internal scratch']
  %s0 = inlined_call_operand.hbm [shape: bf16[256,128], index: 0, kind: input, shape index: {}]
  %s1 = inlined_call_operand.hbm [shape: bf16[128,128], index: 1, kind: input, shape index: {}]
  %s2 = inlined_call_operand.vmem [shape: f32[1,128], index: 2, kind: input, shape index: {}]
  %s3 = inlined_call_operand.hbm [shape: bf16[128,128], index: 3, kind: input, shape index: {}]
  %s4 = inlined_call_operand.vmem [shape: f32[1,128], index: 4, kind: input, shape index: {}]
  %s5 = inlined_call_operand.hbm [shape: f32[16,128], index: 5, kind: output, shape index: {}]
  %s6 = sld [smem:[#allocation0]]
  $region65: #{tpu_custom_call.1} parent=0
    _
  %s8 = ssub.s32 1, %s6
  %s9 = scalar_select 0, %s8, %s6
  $region1: #{tpu_custom_call.1} parent=0
    #allocation2 [shape = 'u8[65536]{0}', space=vmem, size = 0x10000, scoped, tag = 'input window, operand 0']
    #allocation3 [shape = 's32[2]{0}', space=sflag, size = 0x8, scoped, tag = 'scoped memory for tpu_custom_call.1']
    #allocation4 [shape = 's32[2]{0}', space=sflag, size = 0x8, scoped, tag = 'scoped memory for tpu_custom_call.1']
    #allocation5 [shape = 'u8[32768]{0}', space=vmem, size = 0x8000, scoped, tag = 'input window, operand 1, single buffered']
    #allocation6 [shape = 's32[1]{0}', space=sflag, size = 0x4, scoped, tag = 'scoped memory for tpu_custom_call.1']
    #allocation7 [shape = 'u8[32768]{0}', space=vmem, size = 0x8000, scoped, tag = 'input window, operand 3, single buffered']
    #allocation8 [shape = 'u8[8192]{0}', space=vmem, size = 0x2000, scoped, tag = 'output window, operand 0']
    %10 = vsyncpa [#allocation3], 0
    %s11 = scalar_lea.sflag [#allocation3], 1
    %12 = vsyncpa %s11, 0
    %13 = vsyncpa [#allocation6], 0
    %14 = vsyncpa [#allocation4], 0
    %s15 = scalar_lea.sflag [#allocation4], 1
    %16 = vsyncpa %s15, 0
    loop: start=0, step=1, limit=4
    $region2: #{tpu_custom_call.1} parent=1 // loop_pre_header
      _
    $region3: #{tpu_custom_call.1} parent=1 // loop_header
      %s18 = sphi 0, %s22
      %p19 = scmp.ge.s32.totalorder %s18, 4
      %s28 = sphi 0, %s30
      %s31 = sphi 0, %s28
      %s32 = sphi 0, %s31
      %s48 = sphi 0, %s32
      %s52 = sphi 0, %s52
      %s54 = sphi 0, %s52
      %s55 = sphi 0, %s54
      %s69 = sphi 0, %s55
      %s73 = sphi 0, %s73
      %s75 = sphi 0, %s73
      %s76 = sphi 0, %s75
      %s90 = sphi 0, %s76
      %s94 = sphi 0, %s94
      %s96 = sphi 0, %s94
      %s97 = sphi 0, %s96
      %s111 = sphi 0, %s97
      %s115 = sphi 0, %s115
      %s117 = sphi 0, %s115
      %s118 = sphi 0, %s117
      %s132 = sphi 0, %s118
      %s138 = sphi 0, %s140
      %s141 = sphi 0, %s138
      %s142 = sphi 0, %s141
      %s158 = sphi 0, %s142
    $region4: #{tpu_custom_call.1} parent=1 // loop_header_branch
      %21 = sbr.rel (%p19) target = $region8
    $region5: #{tpu_custom_call.1} parent=1 // loop_body
      %s23 = ssub.s32 %s18, 1
      %s24 = ssub.s32 %s18, 2
      %s25 = sadd.s32 %s18, 1
      %s26 = ssub.s32 %s18, %s25
      %p27 = scmp.eq.s32.totalorder %s26, 0
      %s29 = sadd.s32 %s28, 1
      %s30 = scalar_select %p27, %s28, %s29
      %p33 = pneg %p27
      %p34 = scmp.eq.s32.totalorder %s18, 1
      %p35 = por %p33, %p34
      %p36 = scmp.ne.s32.totalorder %s28, %s31
      %p37 = scmp.eq.s32.totalorder %s18, 0
      %p38 = por %p36, %p37
      %p39 = scmp.ne.s32.totalorder %s28, %s31
      %p40 = scmp.eq.s32.totalorder %s23, 1
      %p41 = por %p39, %p40
      %p42 = scmp.ne.s32.totalorder %s31, %s32
      %p43 = scmp.eq.s32.totalorder %s23, 0
      %p44 = por %p42, %p43
      %p45 = scmp.ne.s32.totalorder %s31, %s32
      %p46 = scmp.eq.s32.totalorder %s24, 1
      %p47 = por %p45, %p46
      %p49 = scmp.ne.s32.totalorder %s32, %s48
      %p50 = scmp.eq.s32.totalorder %s24, 0
      %p51 = por %p49, %p50
      %s53 = sadd.s32 %s52, 1
      %p56 = scmp.eq.s32.totalorder %s18, 1
      %p57 = scmp.ne.s32.totalorder %s52, %s54
      %p58 = scmp.eq.s32.totalorder %s18, 0
      %p59 = por %p57, %p58
      %p60 = scmp.ne.s32.totalorder %s52, %s54
      %p61 = scmp.eq.s32.totalorder %s23, 1
      %p62 = por %p60, %p61
      %p63 = scmp.ne.s32.totalorder %s54, %s55
      %p64 = scmp.eq.s32.totalorder %s23, 0
      %p65 = por %p63, %p64
      %p66 = scmp.ne.s32.totalorder %s54, %s55
      %p67 = scmp.eq.s32.totalorder %s24, 1
      %p68 = por %p66, %p67
      %p70 = scmp.ne.s32.totalorder %s55, %s69
      %p71 = scmp.eq.s32.totalorder %s24, 0
      %p72 = por %p70, %p71
      %s74 = sadd.s32 %s73, 1
      %p77 = scmp.eq.s32.totalorder %s18, 1
      %p78 = scmp.ne.s32.totalorder %s73, %s75
      %p79 = scmp.eq.s32.totalorder %s18, 0
      %p80 = por %p78, %p79
      %p81 = scmp.ne.s32.totalorder %s73, %s75
      %p82 = scmp.eq.s32.totalorder %s23, 1
      %p83 = por %p81, %p82
      %p84 = scmp.ne.s32.totalorder %s75, %s76
      %p85 = scmp.eq.s32.totalorder %s23, 0
      %p86 = por %p84, %p85
      %p87 = scmp.ne.s32.totalorder %s75, %s76
      %p88 = scmp.eq.s32.totalorder %s24, 1
      %p89 = por %p87, %p88
      %p91 = scmp.ne.s32.totalorder %s76, %s90
      %p92 = scmp.eq.s32.totalorder %s24, 0
      %p93 = por %p91, %p92
      %s95 = sadd.s32 %s94, 1
      %p98 = scmp.eq.s32.totalorder %s18, 1
      %p99 = scmp.ne.s32.totalorder %s94, %s96
      %p100 = scmp.eq.s32.totalorder %s18, 0
      %p101 = por %p99, %p100
      %p102 = scmp.ne.s32.totalorder %s94, %s96
      %p103 = scmp.eq.s32.totalorder %s23, 1
      %p104 = por %p102, %p103
      %p105 = scmp.ne.s32.totalorder %s96, %s97
      %p106 = scmp.eq.s32.totalorder %s23, 0
      %p107 = por %p105, %p106
      %p108 = scmp.ne.s32.totalorder %s96, %s97
      %p109 = scmp.eq.s32.totalorder %s24, 1
      %p110 = por %p108, %p109
      %p112 = scmp.ne.s32.totalorder %s97, %s111
      %p113 = scmp.eq.s32.totalorder %s24, 0
      %p114 = por %p112, %p113
      %s116 = sadd.s32 %s115, 1
      %p119 = scmp.eq.s32.totalorder %s18, 1
      %p120 = scmp.ne.s32.totalorder %s115, %s117
      %p121 = scmp.eq.s32.totalorder %s18, 0
      %p122 = por %p120, %p121
      %p123 = scmp.ne.s32.totalorder %s115, %s117
      %p124 = scmp.eq.s32.totalorder %s23, 1
      %p125 = por %p123, %p124
      %p126 = scmp.ne.s32.totalorder %s117, %s118
      %p127 = scmp.eq.s32.totalorder %s23, 0
      %p128 = por %p126, %p127
      %p129 = scmp.ne.s32.totalorder %s117, %s118
      %p130 = scmp.eq.s32.totalorder %s24, 1
      %p131 = por %p129, %p130
      %p133 = scmp.ne.s32.totalorder %s118, %s132
      %p134 = scmp.eq.s32.totalorder %s24, 0
      %p135 = por %p133, %p134
      %s136 = ssub.s32 %s18, %s25
      %p137 = scmp.eq.s32.totalorder %s136, 0
      %s139 = sadd.s32 %s138, 1
      %s140 = scalar_select %p137, %s138, %s139
      %p143 = pneg %p137
      %p144 = scmp.eq.s32.totalorder %s18, 1
      %p145 = por %p143, %p144
      %p146 = scmp.ne.s32.totalorder %s138, %s141
      %p147 = scmp.eq.s32.totalorder %s18, 0
      %p148 = por %p146, %p147
      %p149 = scmp.ne.s32.totalorder %s138, %s141
      %p150 = scmp.eq.s32.totalorder %s23, 1
      %p151 = por %p149, %p150
      %p152 = scmp.ne.s32.totalorder %s141, %s142
      %p153 = scmp.eq.s32.totalorder %s23, 0
      %p154 = por %p152, %p153
      %p155 = scmp.ne.s32.totalorder %s141, %s142
      %p156 = scmp.eq.s32.totalorder %s24, 1
      %p157 = por %p155, %p156
      %p159 = scmp.ne.s32.totalorder %s142, %s158
      %p160 = scmp.eq.s32.totalorder %s24, 0
      %p161 = por %p159, %p160
      %p162 = scmp.le.s32.totalorder 1, %s18
      %p163 = scmp.lt.s32.totalorder %s18, 3
      %p164 = pnand %p162, %p163
      %p165 = pneg %p164
      // Predicated region
      $region9: #{tpu_custom_call.1} parent=5 // pred_check
        _
      $region10: #{tpu_custom_call.1} parent=5 // pred_check_branch
        %167 = sbr.rel (%p164) target = $region12
      $region11: #{tpu_custom_call.1} parent=5 // pred_region
        %s168 = ssub.s32 %s18, 1
        // Predicated region
        $region13: #{tpu_custom_call.1} parent=11 // pred_check
          %p169 = pneg %p65
        $region14: #{tpu_custom_call.1} parent=11 // pred_check_branch
          %171 = sbr.rel (%p169) target = $region16
        $region15: #{tpu_custom_call.1} parent=11 // pred_region
          %s173 = ssub.s32 1024, 1024
          %174 = vsyncadd [#allocation6], %s173
          %s175 = sshll.u32 [#allocation5], 4
          %s176 = int_to_ptr.vmem [resolvable:$true] %s175
          %181 = dma.hbm_to_vmem [thread:$0]  %s1, 1024, %s176, [#allocation6], 64, 64, 4
        $region16: #{tpu_custom_call.1} parent=11 // pred_fallthru
          _
        // Predicated region
        $region17: #{tpu_custom_call.1} parent=11 // pred_check
          %p182 = pneg %p86
        $region18: #{tpu_custom_call.1} parent=11 // pred_check_branch
          %184 = sbr.rel (%p182) target = $region20
        $region19: #{tpu_custom_call.1} parent=11 // pred_region
          _
        $region20: #{tpu_custom_call.1} parent=11 // pred_fallthru
          _
        // Predicated region
        $region21: #{tpu_custom_call.1} parent=11 // pred_check
          %p185 = pneg %p107
        $region22: #{tpu_custom_call.1} parent=11 // pred_check_branch
          %187 = sbr.rel (%p185) target = $region24
        $region23: #{tpu_custom_call.1} parent=11 // pred_region
          %s189 = ssub.s32 1024, 1024
          %190 = vsyncadd [#allocation6], %s189
          %s191 = sshll.u32 [#allocation7], 4
          %s192 = int_to_ptr.vmem [resolvable:$true] %s191
          %197 = dma.hbm_to_vmem [thread:$0]  %s3, 1024, %s192, [#allocation6], 64, 64, 4
        $region24: #{tpu_custom_call.1} parent=11 // pred_fallthru
          _
        // Predicated region
        $region25: #{tpu_custom_call.1} parent=11 // pred_check
          %p198 = pneg %p128
        $region26: #{tpu_custom_call.1} parent=11 // pred_check_branch
          %200 = sbr.rel (%p198) target = $region28
        $region27: #{tpu_custom_call.1} parent=11 // pred_region
          _
        $region28: #{tpu_custom_call.1} parent=11 // pred_fallthru
          _
      $region12: #{tpu_custom_call.1} parent=5 // pred_fallthru
        _
      %p201 = scmp.lt.s32.totalorder %s18, 2
      // Predicated region
      $region29: #{tpu_custom_call.1} parent=5 // pred_check
        %p202 = pneg %p201
      $region30: #{tpu_custom_call.1} parent=5 // pred_check_branch
        %204 = sbr.rel (%p202) target = $region32
      $region31: #{tpu_custom_call.1} parent=5 // pred_region
        // Predicated region
        $region33: #{tpu_custom_call.1} parent=31 // pred_check
          %p205 = pneg %p38
        $region34: #{tpu_custom_call.1} parent=31 // pred_check_branch
          %207 = sbr.rel (%p205) target = $region36
        $region35: #{tpu_custom_call.1} parent=31 // pred_region
          %s208 = sand.u32 %s28, 1
          %s209 = scalar_lea.sflag [#allocation3], %s208
          %s210 = sand.u32 %s28, 1
          %s211 = smul.addr %s210, 64
          %s212 = scalar_lea.vmem [#allocation2], %s211
          %s213 = smul.u32 16, %s18
          %s215 = ssub.s32 1024, 1024
          %216 = vsyncadd %s209, %s215
          %s217 = smul.addr %s213, 64
          %s218 = scalar_lea.hbm %s0, %s217
          %s219 = sshll.u32 %s212, 4
          %s220 = int_to_ptr.vmem [resolvable:$true] %s219
          %225 = dma.hbm_to_vmem [thread:$0]  %s218, 1024, %s220, %s209, 64, 64, 4
        $region36: #{tpu_custom_call.1} parent=31 // pred_fallthru
          _
      $region32: #{tpu_custom_call.1} parent=5 // pred_fallthru
        _
      %p226 = scmp.le.s32.totalorder 1, %s18
      %p227 = scmp.lt.s32.totalorder %s18, 3
      %p228 = pnand %p226, %p227
      %p229 = pneg %p228
      // Predicated region
      $region37: #{tpu_custom_call.1} parent=5 // pred_check
        _
      $region38: #{tpu_custom_call.1} parent=5 // pred_check_branch
        %231 = sbr.rel (%p228) target = $region40
      $region39: #{tpu_custom_call.1} parent=5 // pred_region
        %s232 = ssub.s32 %s18, 1
        %s233 = sand.u32 %s31, 1
        %s234 = scalar_lea.sflag [#allocation3], %s233
        %s235 = sand.u32 %s31, 1
        %s236 = smul.addr %s235, 64
        %s237 = scalar_lea.vmem [#allocation2], %s236
        // Predicated region
        $region41: #{tpu_custom_call.1} parent=39 // pred_check
          %p238 = pneg %p44
        $region42: #{tpu_custom_call.1} parent=39 // pred_check_branch
          %240 = sbr.rel (%p238) target = $region44
        $region43: #{tpu_custom_call.1} parent=39 // pred_region
          %241 = dma.done %s234, 1024
        $region44: #{tpu_custom_call.1} parent=39 // pred_fallthru
          _
        // Predicated region
        $region45: #{tpu_custom_call.1} parent=39 // pred_check
          %p242 = pneg %p65
        $region46: #{tpu_custom_call.1} parent=39 // pred_check_branch
          %244 = sbr.rel (%p242) target = $region48
        $region47: #{tpu_custom_call.1} parent=39 // pred_region
          %245 = dma.done [#allocation6], 1024
        $region48: #{tpu_custom_call.1} parent=39 // pred_fallthru
          _
        // Predicated region
        $region49: #{tpu_custom_call.1} parent=39 // pred_check
          %p246 = pneg %p107
        $region50: #{tpu_custom_call.1} parent=39 // pred_check_branch
          %248 = sbr.rel (%p246) target = $region52
        $region51: #{tpu_custom_call.1} parent=39 // pred_region
          %249 = dma.done [#allocation6], 1024
        $region52: #{tpu_custom_call.1} parent=39 // pred_fallthru
          _
        %s250 = sand.u32 %s31, 1
        %s251 = scalar_lea.sflag [#allocation3], %s250
        %s252 = sand.u32 %s31, 1
        %s253 = smul.addr %s252, 64
        %s254 = scalar_lea.vmem [#allocation2], %s253
        %p255 = pneg %p44
        %p256 = pneg %p41
        %p257 = pneg %p65
        %p258 = pneg %p62
        %p259 = pneg %p86
        %p260 = pneg %p83
        %p261 = pneg %p107
        %p262 = pneg %p104
        %p263 = pneg %p128
        %p264 = pneg %p125
        %p265 = pneg %p154
        %p266 = pneg %p151
        %s267 = sand.u32 %s141, 1
        %s268 = scalar_lea.sflag [#allocation4], %s267
        %s269 = sand.u32 %s141, 1
        %s270 = smul.addr %s269, 8
        %s271 = scalar_lea.vmem [#allocation8], %s270
        %s272 = smul.u32 16, %s23
        %v274 = vld [vmem:[%s237] sm:$0xf]
        %v275 = vld [vmem:[%s237 + $0x4] sm:$0xf]
        %v276 = vld [vmem:[%s237 + $0x8] sm:$0xf]
        %v277 = vld [vmem:[%s237 + $0xc] sm:$0xf]
        %v278 = vld [vmem:[%s237 + $0x10] sm:$0xf]
        %v279 = vld [vmem:[%s237 + $0x14] sm:$0xf]
        %v280 = vld [vmem:[%s237 + $0x18] sm:$0xf]
        %v281 = vld [vmem:[%s237 + $0x1c] sm:$0xf]
        %v282 = vld [vmem:[%s237 + $0x20] sm:$0xf]
        %v283 = vld [vmem:[%s237 + $0x24] sm:$0xf]
        %v284 = vld [vmem:[%s237 + $0x28] sm:$0xf]
        %v285 = vld [vmem:[%s237 + $0x2c] sm:$0xf]
        %v286 = vld [vmem:[%s237 + $0x30] sm:$0xf]
        %v287 = vld [vmem:[%s237 + $0x34] sm:$0xf]
        %v288 = vld [vmem:[%s237 + $0x38] sm:$0xf]
        %v289 = vld [vmem:[%s237 + $0x3c] sm:$0xf]
        %v290 = vld [vmem:[#allocation5] sm:$0xf]
        %v291 = vld [vmem:[#allocation5 + $0x4] sm:$0xf]
        %v292 = vld [vmem:[#allocation5 + $0x8] sm:$0xf]
        %v293 = vld [vmem:[#allocation5 + $0xc] sm:$0xf]
        %v294 = vld [vmem:[#allocation5 + $0x10] sm:$0xf]
        %v295 = vld [vmem:[#allocation5 + $0x14] sm:$0xf]
        %v296 = vld [vmem:[#allocation5 + $0x18] sm:$0xf]
        %v297 = vld [vmem:[#allocation5 + $0x1c] sm:$0xf]
        %v298 = vld [vmem:[#allocation5 + $0x20] sm:$0xf]
        %v299 = vld [vmem:[#allocation5 + $0x24] sm:$0xf]
        %v300 = vld [vmem:[#allocation5 + $0x28] sm:$0xf]
        %v301 = vld [vmem:[#allocation5 + $0x2c] sm:$0xf]
        %v302 = vld [vmem:[#allocation5 + $0x30] sm:$0xf]
        %v303 = vld [vmem:[#allocation5 + $0x34] sm:$0xf]
        %v304 = vld [vmem:[#allocation5 + $0x38] sm:$0xf]
        %v305 = vld [vmem:[#allocation5 + $0x3c] sm:$0xf]
        %v306 = vld [vmem:[%s2] sm:$0x1]
        %v308 = vlaneseq
        %v309 = vshrl.u32 %v308, 7
        %v310 = vsub.s32 0, %v309
        %v311 = vrot.slane %v306, %v310
        %v329 = vunpack.c.l.b16 %v274
        %v330 = vunpack.c.l.b16 %v275
        %v331 = vunpack.c.l.b16 %v276
        %v332 = vunpack.c.l.b16 %v277
        %v333 = vunpack.c.l.b16 %v278
        %v334 = vunpack.c.l.b16 %v279
        %v335 = vunpack.c.l.b16 %v280
        %v336 = vunpack.c.l.b16 %v281
        %v337 = vunpack.c.l.b16 %v282
        %v338 = vunpack.c.l.b16 %v283
        %v339 = vunpack.c.l.b16 %v284
        %v340 = vunpack.c.l.b16 %v285
        %v341 = vunpack.c.l.b16 %v286
        %v342 = vunpack.c.l.b16 %v287
        %v343 = vunpack.c.l.b16 %v288
        %v344 = vunpack.c.l.b16 %v289
        %v345 = vpack.c.b16 %v330, %v329
        %v346 = vpack.c.b16 %v332, %v331
        %v347 = vpack.c.b16 %v334, %v333
        %v348 = vpack.c.b16 %v336, %v335
        %v349 = vpack.c.b16 %v338, %v337
        %v350 = vpack.c.b16 %v340, %v339
        %v351 = vpack.c.b16 %v342, %v341
        %v352 = vpack.c.b16 %v344, %v343
        %v377 = vunpack.c.l.b16 %v290
        %v378 = vunpack.c.l.b16 %v291
        %v379 = vunpack.c.l.b16 %v292
        %v380 = vunpack.c.l.b16 %v293
        %v381 = vunpack.c.l.b16 %v294
        %v382 = vunpack.c.l.b16 %v295
        %v383 = vunpack.c.l.b16 %v296
        %v384 = vunpack.c.l.b16 %v297
        %v385 = vunpack.c.l.b16 %v298
        %v386 = vunpack.c.l.b16 %v299
        %v387 = vunpack.c.l.b16 %v300
        %v388 = vunpack.c.l.b16 %v301
        %v389 = vunpack.c.l.b16 %v302
        %v390 = vunpack.c.l.b16 %v303
        %v391 = vunpack.c.l.b16 %v304
        %v392 = vunpack.c.l.b16 %v305
        %v393 = vpack.c.b16 %v378, %v377
        %v394 = vpack.c.b16 %v380, %v379
        %v395 = vpack.c.b16 %v382, %v381
        %v396 = vpack.c.b16 %v384, %v383
        %v397 = vpack.c.b16 %v386, %v385
        %v398 = vpack.c.b16 %v388, %v387
        %v399 = vpack.c.b16 %v390, %v389
        %v400 = vpack.c.b16 %v392, %v391
        %409 = vmatprep.subr.bf16.mxu0 0
        %410 = vmatpush1.bf16.msra.mxu0 %v393
        %411 = vmatprep.subr.bf16.mxu0 0
        %412 = vmatpush1.bf16.msra.mxu0 %v394
        %413 = vmatprep.subr.bf16.mxu0 0
        %414 = vmatpush1.bf16.msra.mxu0 %v395
        %415 = vmatprep.subr.bf16.mxu0 0
        %416 = vmatpush1.bf16.msra.mxu0 %v396
        %417 = vmatprep.subr.bf16.mxu0 0
        %418 = vmatpush1.bf16.msra.mxu0 %v397
        %419 = vmatprep.subr.bf16.mxu0 0
        %420 = vmatpush1.bf16.msra.mxu0 %v398
        %421 = vmatprep.subr.bf16.mxu0 0
        %422 = vmatpush1.bf16.msra.mxu0 %v399
        %423 = vmatprep.subr.bf16.mxu0 0
        %424 = vmatpush1.bf16.msra.mxu0 %v400
        %425 = vmatprep.subr.bf16.mxu0 0
        %426 = vmatpush1.bf16.msra.mxu0 0
        %427 = vmatprep.subr.bf16.mxu0 0
        %428 = vmatpush1.bf16.msra.mxu0 0
        %429 = vmatprep.subr.bf16.mxu0 0
        %430 = vmatpush1.bf16.msra.mxu0 0
        %431 = vmatprep.subr.bf16.mxu0 0
        %432 = vmatpush1.bf16.msra.mxu0 0
        %433 = vmatprep.subr.bf16.mxu0 0
        %434 = vmatpush1.bf16.msra.mxu0 0
        %435 = vmatprep.subr.bf16.mxu0 0
        %436 = vmatpush1.bf16.msra.mxu0 0
        %437 = vmatprep.subr.bf16.mxu0 0
        %438 = vmatpush1.bf16.msra.mxu0 0
        %439 = vmatprep.subr.bf16.mxu0 0
        %440 = vmatpush1.bf16.msra.mxu0 0
        %441 = vmatprep.mubr.bf16.mxu0 0
        %442 = vmatmul.mubr.bf16.gmra.mrb[0].mxu0 %v345
        %v443 = vpop.f32.mrb[0].mxu0
        %v444 = vadd.f32 %v311, %v443
        %v445 = vpop.f32.mrb[0].mxu0
        %v446 = vpop.f32.mrb[0].mxu0
        %v447 = vadd.f32 %v311, %v446
        %v448 = vpop.f32.mrb[0].mxu0
        %449 = vmatprep.mubr.bf16.mxu0 0
        %450 = vmatmul.mubr.bf16.gmra.mrb[0].mxu0 %v346
        %v451 = vpop.f32.mrb[0].mxu0
        %v452 = vadd.f32 %v311, %v451
        %v453 = vpop.f32.mrb[0].mxu0
        %v454 = vpop.f32.mrb[0].mxu0
        %v455 = vadd.f32 %v311, %v454
        %v456 = vpop.f32.mrb[0].mxu0
        %457 = vmatprep.mubr.bf16.mxu0 0
        %458 = vmatmul.mubr.bf16.gmra.mrb[0].mxu0 %v347
        %v459 = vpop.f32.mrb[0].mxu0
        %v460 = vadd.f32 %v311, %v459
        %v461 = vpop.f32.mrb[0].mxu0
        %v462 = vpop.f32.mrb[0].mxu0
        %v463 = vadd.f32 %v311, %v462
        %v464 = vpop.f32.mrb[0].mxu0
        %465 = vmatprep.mubr.bf16.mxu0 0
        %466 = vmatmul.mubr.bf16.gmra.mrb[0].mxu0 %v348
        %v467 = vpop.f32.mrb[0].mxu0
        %v468 = vadd.f32 %v311, %v467
        %v469 = vpop.f32.mrb[0].mxu0
        %v470 = vpop.f32.mrb[0].mxu0
        %v471 = vadd.f32 %v311, %v470
        %v472 = vpop.f32.mrb[0].mxu0
        %473 = vmatprep.mubr.bf16.mxu0 0
        %474 = vmatmul.mubr.bf16.gmra.mrb[0].mxu0 %v349
        %v475 = vpop.f32.mrb[0].mxu0
        %v476 = vadd.f32 %v311, %v475
        %v477 = vpop.f32.mrb[0].mxu0
        %v478 = vpop.f32.mrb[0].mxu0
        %v479 = vadd.f32 %v311, %v478
        %v480 = vpop.f32.mrb[0].mxu0
        %481 = vmatprep.mubr.bf16.mxu0 0
        %482 = vmatmul.mubr.bf16.gmra.mrb[0].mxu0 %v350
        %v483 = vpop.f32.mrb[0].mxu0
        %v484 = vadd.f32 %v311, %v483
        %v485 = vpop.f32.mrb[0].mxu0
        %v486 = vpop.f32.mrb[0].mxu0
        %v487 = vadd.f32 %v311, %v486
        %v488 = vpop.f32.mrb[0].mxu0
        %489 = vmatprep.mubr.bf16.mxu0 0
        %490 = vmatmul.mubr.bf16.gmra.mrb[0].mxu0 %v351
        %v491 = vpop.f32.mrb[0].mxu0
        %v492 = vadd.f32 %v311, %v491
        %v493 = vpop.f32.mrb[0].mxu0
        %v494 = vpop.f32.mrb[0].mxu0
        %v495 = vadd.f32 %v311, %v494
        %v496 = vpop.f32.mrb[0].mxu0
        %497 = vmatprep.mubr.bf16.mxu0 0
        %498 = vmatmul.mubr.bf16.gmra.mrb[0].mxu0 %v352
        %v499 = vpop.f32.mrb[0].mxu0
        %v500 = vadd.f32 %v311, %v499
        %v501 = vpop.f32.mrb[0].mxu0
        %v502 = vpop.f32.mrb[0].mxu0
        %v503 = vadd.f32 %v311, %v502
        %v504 = vpop.f32.mrb[0].mxu0
        %505 = vdwg.mxu0
        %v506 = vmax.f32 %v444, 0.0
        %v507 = vmax.f32 %v447, 0.0
        %v508 = vmax.f32 %v452, 0.0
        %v509 = vmax.f32 %v455, 0.0
        %v510 = vmax.f32 %v460, 0.0
        %v511 = vmax.f32 %v463, 0.0
        %v512 = vmax.f32 %v468, 0.0
        %v513 = vmax.f32 %v471, 0.0
        %v514 = vmax.f32 %v476, 0.0
        %v515 = vmax.f32 %v479, 0.0
        %v516 = vmax.f32 %v484, 0.0
        %v517 = vmax.f32 %v487, 0.0
        %v518 = vmax.f32 %v492, 0.0
        %v519 = vmax.f32 %v495, 0.0
        %v520 = vmax.f32 %v500, 0.0
        %v521 = vmax.f32 %v503, 0.0
        %v522 = vadd.f32 %v506, %v507
        %v523 = vrot.slane %v522, 4
        %v524 = vadd.f32 %v522, %v523
        %v525 = vrot.slane %v524, 2
        %v526 = vadd.f32 %v524, %v525
        %v527 = vrot.slane %v526, 1
        %v528 = vadd.f32 %v526, %v527
        %v529 = vadd.f32 %v508, %v509
        %v530 = vrot.slane %v529, 4
        %v531 = vadd.f32 %v529, %v530
        %v532 = vrot.slane %v531, 2
        %v533 = vadd.f32 %v531, %v532
        %v534 = vrot.slane %v533, 1
        %v535 = vadd.f32 %v533, %v534
        %v536 = vadd.f32 %v510, %v511
        %v537 = vrot.slane %v536, 4
        %v538 = vadd.f32 %v536, %v537
        %v539 = vrot.slane %v538, 2
        %v540 = vadd.f32 %v538, %v539
        %v541 = vrot.slane %v540, 1
        %v542 = vadd.f32 %v540, %v541
        %v543 = vadd.f32 %v512, %v513
        %v544 = vrot.slane %v543, 4
        %v545 = vadd.f32 %v543, %v544
        %v546 = vrot.slane %v545, 2
        %v547 = vadd.f32 %v545, %v546
        %v548 = vrot.slane %v547, 1
        %v549 = vadd.f32 %v547, %v548
        %v550 = vadd.f32 %v514, %v515
        %v551 = vrot.slane %v550, 4
        %v552 = vadd.f32 %v550, %v551
        %v553 = vrot.slane %v552, 2
        %v554 = vadd.f32 %v552, %v553
        %v555 = vrot.slane %v554, 1
        %v556 = vadd.f32 %v554, %v555
        %v557 = vadd.f32 %v516, %v517
        %v558 = vrot.slane %v557, 4
        %v559 = vadd.f32 %v557, %v558
        %v560 = vrot.slane %v559, 2
        %v561 = vadd.f32 %v559, %v560
        %v562 = vrot.slane %v561, 1
        %v563 = vadd.f32 %v561, %v562
        %v564 = vadd.f32 %v518, %v519
        %v565 = vrot.slane %v564, 4
        %v566 = vadd.f32 %v564, %v565
        %v567 = vrot.slane %v566, 2
        %v568 = vadd.f32 %v566, %v567
        %v569 = vrot.slane %v568, 1
        %v570 = vadd.f32 %v568, %v569
        %v571 = vadd.f32 %v520, %v521
        %v572 = vrot.slane %v571, 4
        %v573 = vadd.f32 %v571, %v572
        %v574 = vrot.slane %v573, 2
        %v575 = vadd.f32 %v573, %v574
        %v576 = vrot.slane %v575, 1
        %v577 = vadd.f32 %v575, %v576
        %v578 = vmul.f32 %v528, 0.0625
        %v579 = vmul.f32 %v535, 0.0625
        %v580 = vmul.f32 %v542, 0.0625
        %v581 = vmul.f32 %v549, 0.0625
        %v582 = vmul.f32 %v556, 0.0625
        %v583 = vmul.f32 %v563, 0.0625
        %v584 = vmul.f32 %v570, 0.0625
        %v585 = vmul.f32 %v577, 0.0625
        %v586 = vpack.c.bf16 %v578, %v578
        %v587 = vpack.c.bf16 %v579, %v579
        %v588 = vpack.c.bf16 %v580, %v580
        %v589 = vpack.c.bf16 %v581, %v581
        %v590 = vpack.c.bf16 %v582, %v582
        %v591 = vpack.c.bf16 %v583, %v583
        %v592 = vpack.c.bf16 %v584, %v584
        %v593 = vpack.c.bf16 %v585, %v585
        %v594 = vld [vmem:[#allocation7] sm:$0xf]
        %v595 = vld [vmem:[#allocation7 + $0x4] sm:$0xf]
        %v596 = vld [vmem:[#allocation7 + $0x8] sm:$0xf]
        %v597 = vld [vmem:[#allocation7 + $0xc] sm:$0xf]
        %v598 = vld [vmem:[#allocation7 + $0x10] sm:$0xf]
        %v599 = vld [vmem:[#allocation7 + $0x14] sm:$0xf]
        %v600 = vld [vmem:[#allocation7 + $0x18] sm:$0xf]
        %v601 = vld [vmem:[#allocation7 + $0x1c] sm:$0xf]
        %v602 = vld [vmem:[#allocation7 + $0x20] sm:$0xf]
        %v603 = vld [vmem:[#allocation7 + $0x24] sm:$0xf]
        %v604 = vld [vmem:[#allocation7 + $0x28] sm:$0xf]
        %v605 = vld [vmem:[#allocation7 + $0x2c] sm:$0xf]
        %v606 = vld [vmem:[#allocation7 + $0x30] sm:$0xf]
        %v607 = vld [vmem:[#allocation7 + $0x34] sm:$0xf]
        %v608 = vld [vmem:[#allocation7 + $0x38] sm:$0xf]
        %v609 = vld [vmem:[#allocation7 + $0x3c] sm:$0xf]
        %v610 = vld [vmem:[%s4] sm:$0x1]
        %v612 = vlaneseq
        %v613 = vshrl.u32 %v612, 7
        %v614 = vsub.s32 0, %v613
        %v615 = vrot.slane %v610, %v614
        %v625 = vunpack.c.l.b16 %v586
        %v626 = vunpack.c.l.b16 %v587
        %v627 = vunpack.c.l.b16 %v588
        %v628 = vunpack.c.l.b16 %v589
        %v629 = vunpack.c.l.b16 %v590
        %v630 = vunpack.c.l.b16 %v591
        %v631 = vunpack.c.l.b16 %v592
        %v632 = vunpack.c.l.b16 %v593
        %vm633 = vcmask 1041409
        %v634 = vsel %vm633, %v626, %v625
        %vm635 = vcmask 1042434
        %v636 = vsel %vm635, %v627, %v634
        %vm637 = vcmask 1043459
        %v638 = vsel %vm637, %v628, %v636
        %vm639 = vcmask 1044484
        %v640 = vsel %vm639, %v629, %v638
        %vm641 = vcmask 1045509
        %v642 = vsel %vm641, %v630, %v640
        %vm643 = vcmask 1046534
        %v644 = vsel %vm643, %v631, %v642
        %vm645 = vcmask 1047559
        %v646 = vsel %vm645, %v632, %v644
        %v647 = vpack.c.b16 %v646, %v646
        %v665 = vunpack.c.l.b16 %v594
        %v666 = vunpack.c.l.b16 %v595
        %v667 = vunpack.c.l.b16 %v596
        %v668 = vunpack.c.l.b16 %v597
        %v669 = vunpack.c.l.b16 %v598
        %v670 = vunpack.c.l.b16 %v599
        %v671 = vunpack.c.l.b16 %v600
        %v672 = vunpack.c.l.b16 %v601
        %v673 = vunpack.c.l.b16 %v602
        %v674 = vunpack.c.l.b16 %v603
        %v675 = vunpack.c.l.b16 %v604
        %v676 = vunpack.c.l.b16 %v605
        %v677 = vunpack.c.l.b16 %v606
        %v678 = vunpack.c.l.b16 %v607
        %v679 = vunpack.c.l.b16 %v608
        %v680 = vunpack.c.l.b16 %v609
        %v681 = vpack.c.b16 %v666, %v665
        %v682 = vpack.c.b16 %v668, %v667
        %v683 = vpack.c.b16 %v670, %v669
        %v684 = vpack.c.b16 %v672, %v671
        %v685 = vpack.c.b16 %v674, %v673
        %v686 = vpack.c.b16 %v676, %v675
        %v687 = vpack.c.b16 %v678, %v677
        %v688 = vpack.c.b16 %v680, %v679
        %697 = vmatprep.subr.bf16.mxu0 0
        %698 = vmatpush1.bf16.msra.mxu0 %v681
        %699 = vmatprep.subr.bf16.mxu0 0
        %700 = vmatpush1.bf16.msra.mxu0 %v682
        %701 = vmatprep.subr.bf16.mxu0 0
        %702 = vmatpush1.bf16.msra.mxu0 %v683
        %703 = vmatprep.subr.bf16.mxu0 0
        %704 = vmatpush1.bf16.msra.mxu0 %v684
        %705 = vmatprep.subr.bf16.mxu0 0
        %706 = vmatpush1.bf16.msra.mxu0 %v685
        %707 = vmatprep.subr.bf16.mxu0 0
        %708 = vmatpush1.bf16.msra.mxu0 %v686
        %709 = vmatprep.subr.bf16.mxu0 0
        %710 = vmatpush1.bf16.msra.mxu0 %v687
        %711 = vmatprep.subr.bf16.mxu0 0
        %712 = vmatpush1.bf16.msra.mxu0 %v688
        %713 = vmatprep.subr.bf16.mxu0 0
        %714 = vmatpush1.bf16.msra.mxu0 0
        %715 = vmatprep.subr.bf16.mxu0 0
        %716 = vmatpush1.bf16.msra.mxu0 0
        %717 = vmatprep.subr.bf16.mxu0 0
        %718 = vmatpush1.bf16.msra.mxu0 0
        %719 = vmatprep.subr.bf16.mxu0 0
        %720 = vmatpush1.bf16.msra.mxu0 0
        %721 = vmatprep.subr.bf16.mxu0 0
        %722 = vmatpush1.bf16.msra.mxu0 0
        %723 = vmatprep.subr.bf16.mxu0 0
        %724 = vmatpush1.bf16.msra.mxu0 0
        %725 = vmatprep.subr.bf16.mxu0 0
        %726 = vmatpush1.bf16.msra.mxu0 0
        %727 = vmatprep.subr.bf16.mxu0 0
        %728 = vmatpush1.bf16.msra.mxu0 0
        %729 = vmatprep.mubr.bf16.mxu0 0
        %730 = vmatmul.mubr.bf16.gmra.mrb[0].mxu0 %v647
        %v731 = vpop.f32.mrb[0].mxu0
        %v732 = vadd.f32 %v615, %v731
        %v733 = vpop.f32.mrb[0].mxu0
        %v734 = vpop.f32.mrb[0].mxu0
        %v735 = vpop.f32.mrb[0].mxu0
        %736 = vdwg.mxu0
        %737 = vst [vmem:[%s271] sm:$0xff] %v732
        %s738 = sand.u32 %s141, 1
        %s739 = scalar_lea.sflag [#allocation4], %s738
        %s740 = sand.u32 %s141, 1
        %s741 = smul.addr %s740, 8
        %s742 = scalar_lea.vmem [#allocation8], %s741
        // Predicated region
        $region53: #{tpu_custom_call.1} parent=39 // pred_check
          %p743 = pneg %p151
        $region54: #{tpu_custom_call.1} parent=39 // pred_check_branch
          %745 = sbr.rel (%p743) target = $region56
        $region55: #{tpu_custom_call.1} parent=39 // pred_region
          %s747 = ssub.s32 128, 128
          %748 = vsyncadd %s739, %s747
          %s749 = smul.addr %s23, 128
          %s750 = scalar_lea.hbm %s5, %s749
          %s752 = sshll.u32 %s742, 4
          %s753 = int_to_ptr.vmem [resolvable:$true] %s752
          %755 = dma.vmem_to_hbm [thread:$0]  %s753, 128, %s750, %s739
        $region56: #{tpu_custom_call.1} parent=39 // pred_fallthru
          _
      $region40: #{tpu_custom_call.1} parent=5 // pred_fallthru
        _
      %p756 = scmp.le.s32.totalorder 2, %s18
      // Predicated region
      $region57: #{tpu_custom_call.1} parent=5 // pred_check
        %p757 = pneg %p756
      $region58: #{tpu_custom_call.1} parent=5 // pred_check_branch
        %759 = sbr.rel (%p757) target = $region60
      $region59: #{tpu_custom_call.1} parent=5 // pred_region
        %s760 = ssub.s32 %s18, 2
        // Predicated region
        $region61: #{tpu_custom_call.1} parent=59 // pred_check
          %p761 = pneg %p157
        $region62: #{tpu_custom_call.1} parent=59 // pred_check_branch
          %763 = sbr.rel (%p761) target = $region64
        $region63: #{tpu_custom_call.1} parent=59 // pred_region
          %s764 = sand.u32 %s142, 1
          %s765 = scalar_lea.sflag [#allocation4], %s764
          %s766 = sand.u32 %s142, 1
          %s767 = smul.addr %s766, 8
          %s768 = scalar_lea.vmem [#allocation8], %s767
          %769 = dma.done %s765, 128
        $region64: #{tpu_custom_call.1} parent=59 // pred_fallthru
          _
      $region60: #{tpu_custom_call.1} parent=5 // pred_fallthru
        _
    $region6: #{tpu_custom_call.1} parent=1 // loop_footer
      %s22 = sadd.s32 1, %s18
    $region7: #{tpu_custom_call.1} parent=1 // loop_footer_branch
      %17 = sbr.rel target = $region3
    $region8: #{tpu_custom_call.1} parent=1 // loop_exit
      _
    %770 = vsyncpa [#allocation3], 1
    %s771 = scalar_lea.sflag [#allocation3], 1
    %772 = vsyncpa %s771, 1
    %773 = vsyncpa [#allocation6], 1
    %774 = vsyncpa [#allocation4], 1
    %s775 = scalar_lea.sflag [#allocation4], 1
    %776 = vsyncpa %s775, 1

</llo_original>
